<compile_context>
chip_gen: v6e
topology: v6e:2x2x1
jax: 0.10.0
libtpu: 0.0.40
codegen_flags: <defaults>
</compile_context>

<pallas_src>
import jax
import jax.numpy as jnp
from jax import lax
from jax.experimental import pallas as pl
from jax.experimental.pallas import tpu as pltpu

CONV_OUT = 200     # out_channels fixed by the module definition
C_OUT_PAD = 256    # conv channels padded up to a lane-tile multiple
C_IN_PAD = 8       # both branches' input-feature widths padded to a common size


# ------------------------------ Pallas kernel --------------------------------
def _cnn_fused_kernel(x_ref, wconv_ref, bconv_ref, wfc_ref, bfc_ref, out_ref):
    # Per-branch blocks (leading branch axis squeezed away by the BlockSpecs):
    #   x_ref:     (N, C_IN_PAD)            node-major input features
    #   wconv_ref: (3*C_IN_PAD, C_OUT_PAD)  tap-major packed Conv1d weight
    #   bconv_ref: (1, C_OUT_PAD)
    #   wfc_ref:   (C_OUT_PAD, nclass)      transposed Linear weight
    #   bfc_ref:   (1, nclass)
    #   out_ref:   (N, nclass)
    x = x_ref[...]
    n = x.shape[0]

    # --- Conv1d(k=3, s=1, p=1) + ReLU: ONE MXU matmul over the stacked,
    # shifted input.  pltpu.roll is circular, so mask the wrapped row to
    # recover the conv's zero padding.
    row = lax.broadcasted_iota(jnp.int32, x.shape, 0)
    x_prev = jnp.where(row > 0, pltpu.roll(x, shift=1, axis=0), 0.0)           # x[i-1]
    x_next = jnp.where(row < n - 1, pltpu.roll(x, shift=n - 1, axis=0), 0.0)   # x[i+1]
    xs = jnp.concatenate([x_prev, x, x_next], axis=1)           # (N, 3*C_IN_PAD)
    conv = jnp.dot(xs, wconv_ref[...], preferred_element_type=jnp.float32)
    conv = jnp.maximum(conv + bconv_ref[...], 0.0)               # (N, C_OUT_PAD)

    # --- AvgPool2d((3,3), (1,1), padding=1), count_include_pad=True -> sum/9.
    # Separable pass: channel (lane) direction first, then node (sublane)
    # direction, each as circular roll + boundary mask (zero-pad semantics).
    # The padded channels (200..255) are zero after the conv, so they also act
    # as the zero pad for real channel 199's window.
    c = conv.shape[1]
    col = lax.broadcasted_iota(jnp.int32, conv.shape, 1)
    rown = lax.broadcasted_iota(jnp.int32, conv.shape, 0)
    lsum = (conv
            + jnp.where(col > 0, pltpu.roll(conv, shift=1, axis=1), 0.0)
            + jnp.where(col < c - 1, pltpu.roll(conv, shift=c - 1, axis=1), 0.0))
    pooled = (lsum
              + jnp.where(rown > 0, pltpu.roll(lsum, shift=1, axis=0), 0.0)
              + jnp.where(rown < n - 1, pltpu.roll(lsum, shift=n - 1, axis=0), 0.0)
              ) * (1.0 / 9.0)
    # torch applies relu(relu(avgpool)); the average of ReLU'd values is already
    # non-negative, so one maximum preserves exact fidelity.
    pooled = jnp.maximum(pooled, 0.0)

    # --- Linear(200 -> nclass), written directly in (N, nclass) layout.
    out_ref[...] = (
        jnp.dot(pooled, wfc_ref[...], preferred_element_type=jnp.float32)
        + bfc_ref[...])


# -------------------------- host-side packing --------------------------------
def pack_branch_params(wconv, bconv, wfc, bfc):
    """Pack one branch's torch-layout parameters into the kernel layout.

    wconv: (200, c_in, 3) Conv1d weight    bconv: (200,)    Conv1d bias
    wfc:   (nclass, 200)  Linear weight    bfc:   (nclass,) Linear bias
    """
    c_in = wconv.shape[1]
    nclass = wfc.shape[0]
    w3 = jnp.zeros((3, C_IN_PAD, C_OUT_PAD), jnp.float32)
    w3 = w3.at[:, :c_in, :CONV_OUT].set(jnp.transpose(wconv, (2, 1, 0)))
    wconv_packed = w3.reshape(3 * C_IN_PAD, C_OUT_PAD)           # tap-major rows
    bconv_packed = jnp.zeros((1, C_OUT_PAD), jnp.float32).at[0, :CONV_OUT].set(bconv)
    wfc_packed = jnp.zeros((C_OUT_PAD, nclass), jnp.float32).at[:CONV_OUT, :].set(wfc.T)
    bfc_packed = bfc.reshape(1, nclass).astype(jnp.float32)
    return wconv_packed, bconv_packed, wfc_packed, bfc_packed


def pack_params(params_x, params_y):
    """Stack both branches' packed params on a leading branch axis (size 2).

    One-time setup cost; not part of the per-forward hot path."""
    return tuple(jnp.stack([a, b])
                 for a, b in zip(pack_branch_params(*params_x),
                                 pack_branch_params(*params_y)))


@jax.jit
def cnn_layer_forward(x, x2, packed):
    """CNNLayer.forward: (N, c_in_x), (N, c_in_y) -> ((N, nclass), (N, nclass))."""
    wconv_s, bconv_s, wfc_s, bfc_s = packed
    n = x.shape[0]
    nclass = wfc_s.shape[-1]

    # Stack both branches' inputs into a single (2, N, C_IN_PAD) operand; the
    # zero-padded feature columns are inert (their conv-weight rows are zero).
    xin = jnp.zeros((2, n, C_IN_PAD), jnp.float32)
    xin = xin.at[0, :, :x.shape[1]].set(x)
    xin = xin.at[1, :, :x2.shape[1]].set(x2)

    def branch_spec(d0, d1):
        # One branch per grid step; the leading axis is squeezed from the view.
        return pl.BlockSpec((None, d0, d1), lambda b: (b, 0, 0))

    out = pl.pallas_call(
        _cnn_fused_kernel,
        out_shape=jax.ShapeDtypeStruct((2, n, nclass), jnp.float32),
        grid=(2,),
        in_specs=[
            branch_spec(n, C_IN_PAD),
            branch_spec(3 * C_IN_PAD, C_OUT_PAD),
            branch_spec(1, C_OUT_PAD),
            branch_spec(C_OUT_PAD, nclass),
            branch_spec(1, nclass),
        ],
        out_specs=branch_spec(n, nclass),
        compiler_params=pltpu.CompilerParams(
            # Branches are independent -> shard across v7x's two TensorCores.
            dimension_semantics=("parallel",)),
    )(xin, wconv_s, bconv_s, wfc_s, bfc_s)
    return out[0], out[1]


# ----------------------------- pure-JAX reference ----------------------------
def _ref_branch(x, wconv, bconv, wfc, bfc):
    xt = x.T[None]                                   # (1, C_in, N)
    conv = lax.conv_general_dilated(
        xt, wconv, window_strides=(1,), padding=((1, 1),),
        dimension_numbers=("NCH", "OIH", "NCH"),
        precision=lax.Precision.HIGHEST)[0]          # (200, N)
    conv = jax.nn.relu(conv + bconv[:, None])
    pooled = lax.reduce_window(conv, 0.0, lax.add, (3, 3), (1, 1),
                               padding=((1, 1), (1, 1))) / 9.0
    pooled = jax.nn.relu(pooled)
    return jnp.dot(pooled.T, wfc.T, precision=lax.Precision.HIGHEST) + bfc[None, :]


def _init_branch_params(key, c_in, nclass):
    k1, k2, k3, k4 = jax.random.split(key, 4)
    wconv = jax.random.normal(k1, (CONV_OUT, c_in, 3), jnp.float32) * 0.1
    bconv = jax.random.normal(k2, (CONV_OUT,), jnp.float32) * 0.1
    wfc = jax.random.normal(k3, (nclass, CONV_OUT), jnp.float32) * 0.1
    bfc = jax.random.normal(k4, (nclass,), jnp.float32) * 0.1
    return wconv, bconv, wfc, bfc


if __name__ == "__main__":
    # args.l_f_nfeat=4, args.g_f_nfeat=6, args.nclass=3, N(nodes)=16
    N, L_F, G_F, NCLASS = 16, 4, 6, 3

    key = jax.random.PRNGKey(0)
    kx, kx2, kpx, kpy = jax.random.split(key, 4)
    x = jax.random.normal(kx, (N, L_F), jnp.float32)
    x2 = jax.random.normal(kx2, (N, G_F), jnp.float32)

    params_x = _init_branch_params(kpx, L_F, NCLASS)
    params_y = _init_branch_params(kpy, G_F, NCLASS)
    packed = pack_params(params_x, params_y)        # one-time setup

    out_x, out_x2 = cnn_layer_forward(x, x2, packed)
    out_x, out_x2 = jax.block_until_ready((out_x, out_x2))

    ref_x = _ref_branch(x, *params_x)
    ref_x2 = _ref_branch(x2, *params_y)

    assert out_x.shape == (N, NCLASS) and out_x2.shape == (N, NCLASS)
    assert jnp.allclose(out_x, ref_x, rtol=1e-3, atol=1e-3), \
        float(jnp.max(jnp.abs(out_x - ref_x)))
    assert jnp.allclose(out_x2, ref_x2, rtol=1e-3, atol=1e-3), \
        float(jnp.max(jnp.abs(out_x2 - ref_x2)))

    print("KERNEL_OK")
</pallas_src>

<mosaic_0001>
module attributes {stable_mosaic.version = 11 : i64} {
  func.func @_cnn_fused_kernel(%arg0: i32, %arg1: memref<1x16x8xf32, #tpu.memory_space<vmem>>, %arg2: memref<1x24x256xf32, #tpu.memory_space<vmem>>, %arg3: memref<1x1x256xf32, #tpu.memory_space<vmem>>, %arg4: memref<1x256x3xf32, #tpu.memory_space<vmem>>, %arg5: memref<1x1x3xf32, #tpu.memory_space<vmem>>, %arg6: memref<1x16x3xf32, #tpu.memory_space<vmem>>) attributes {dimension_semantics = [#tpu.dimension_semantics<parallel>], iteration_bounds = array<i64: 2>, scalar_prefetch = 0 : i64, scratch_operands = 0 : i64, tpu.core_type = #tpu.core_type<tc>, window_params = [{transform_indices = @transform_0, window_bounds = array<i64: 1, 16, 8>}, {transform_indices = @transform_1, window_bounds = array<i64: 1, 24, 256>}, {transform_indices = @transform_2, window_bounds = array<i64: 1, 1, 256>}, {transform_indices = @transform_3, window_bounds = array<i64: 1, 256, 3>}, {transform_indices = @transform_4, window_bounds = array<i64: 1, 1, 3>}, {transform_indices = @transform_5, window_bounds = array<i64: 1, 16, 3>}]} {
    %c0 = arith.constant 0 : index
    %c0_0 = arith.constant 0 : index
    %c0_1 = arith.constant 0 : index
    %0 = vector.load %arg1[%c0, %c0_0, %c0_1] : memref<1x16x8xf32, #tpu.memory_space<vmem>>, vector<1x16x8xf32>
    %1 = vector.shape_cast %0 : vector<1x16x8xf32> to vector<16x8xf32>
    %2 = tpu.iota {dimensions = array<i32: 0>} : vector<16x8xi32>
    %c0_i32 = arith.constant 0 : i32
    %3 = vector.broadcast %c0_i32 : i32 to vector<16x8xi32>
    %4 = arith.cmpi sgt, %2, %3 : vector<16x8xi32>
    %c1_i32 = arith.constant 1 : i32
    %5 = tpu.dynamic_rotate %1 by %c1_i32 dim 0 : vector<16x8xf32>, i32 -> vector<16x8xf32>
    %cst = arith.constant 0.000000e+00 : f32
    %6 = vector.broadcast %cst : f32 to vector<16x8xf32>
    %7 = arith.select %4, %5, %6 : vector<16x8xi1>, vector<16x8xf32>
    %c15_i32 = arith.constant 15 : i32
    %8 = vector.broadcast %c15_i32 : i32 to vector<16x8xi32>
    %9 = arith.cmpi slt, %2, %8 : vector<16x8xi32>
    %c15_i32_2 = arith.constant 15 : i32
    %10 = tpu.dynamic_rotate %1 by %c15_i32_2 dim 0 : vector<16x8xf32>, i32 -> vector<16x8xf32>
    %cst_3 = arith.constant 0.000000e+00 : f32
    %11 = vector.broadcast %cst_3 : f32 to vector<16x8xf32>
    %12 = arith.select %9, %10, %11 : vector<16x8xi1>, vector<16x8xf32>
    %13 = tpu.concatenate %7, %1, %12 in 1 : vector<16x8xf32>, vector<16x8xf32>, vector<16x8xf32> -> vector<16x24xf32>
    %c0_4 = arith.constant 0 : index
    %c0_5 = arith.constant 0 : index
    %c0_6 = arith.constant 0 : index
    %14 = vector.load %arg2[%c0_4, %c0_5, %c0_6] : memref<1x24x256xf32, #tpu.memory_space<vmem>>, vector<1x24x256xf32>
    %15 = vector.shape_cast %14 : vector<1x24x256xf32> to vector<24x256xf32>
    %cst_7 = arith.constant dense<0.000000e+00> : vector<16x256xf32>
    %16 = tpu.matmul %13, %15, %cst_7 {dimension_numbers = #tpu.dot_dimension_numbers<[1], [0], [0], [1], [0, 0, 1, 1], [], []>} : vector<16x24xf32>, vector<24x256xf32>, vector<16x256xf32> -> vector<16x256xf32>
    %c0_8 = arith.constant 0 : index
    %c0_9 = arith.constant 0 : index
    %c0_10 = arith.constant 0 : index
    %17 = vector.load %arg3[%c0_8, %c0_9, %c0_10] : memref<1x1x256xf32, #tpu.memory_space<vmem>>, vector<1x1x256xf32>
    %18 = vector.shape_cast %17 : vector<1x1x256xf32> to vector<1x256xf32>
    %19 = vector.broadcast %18 : vector<1x256xf32> to vector<16x256xf32>
    %20 = arith.addf %16, %19 : vector<16x256xf32>
    %cst_11 = arith.constant 0.000000e+00 : f32
    %21 = vector.broadcast %cst_11 : f32 to vector<16x256xf32>
    %22 = arith.maximumf %20, %21 : vector<16x256xf32>
    %23 = tpu.iota {dimensions = array<i32: 1>} : vector<16x256xi32>
    %24 = tpu.iota {dimensions = array<i32: 0>} : vector<16x256xi32>
    %c0_i32_12 = arith.constant 0 : i32
    %25 = vector.broadcast %c0_i32_12 : i32 to vector<16x256xi32>
    %26 = arith.cmpi sgt, %23, %25 : vector<16x256xi32>
    %c1_i32_13 = arith.constant 1 : i32
    %27 = tpu.dynamic_rotate %22 by %c1_i32_13 dim 1 : vector<16x256xf32>, i32 -> vector<16x256xf32>
    %cst_14 = arith.constant 0.000000e+00 : f32
    %28 = vector.broadcast %cst_14 : f32 to vector<16x256xf32>
    %29 = arith.select %26, %27, %28 : vector<16x256xi1>, vector<16x256xf32>
    %30 = arith.addf %22, %29 : vector<16x256xf32>
    %c255_i32 = arith.constant 255 : i32
    %31 = vector.broadcast %c255_i32 : i32 to vector<16x256xi32>
    %32 = arith.cmpi slt, %23, %31 : vector<16x256xi32>
    %c255_i32_15 = arith.constant 255 : i32
    %33 = tpu.dynamic_rotate %22 by %c255_i32_15 dim 1 : vector<16x256xf32>, i32 -> vector<16x256xf32>
    %cst_16 = arith.constant 0.000000e+00 : f32
    %34 = vector.broadcast %cst_16 : f32 to vector<16x256xf32>
    %35 = arith.select %32, %33, %34 : vector<16x256xi1>, vector<16x256xf32>
    %36 = arith.addf %30, %35 : vector<16x256xf32>
    %c0_i32_17 = arith.constant 0 : i32
    %37 = vector.broadcast %c0_i32_17 : i32 to vector<16x256xi32>
    %38 = arith.cmpi sgt, %24, %37 : vector<16x256xi32>
    %c1_i32_18 = arith.constant 1 : i32
    %39 = tpu.dynamic_rotate %36 by %c1_i32_18 dim 0 : vector<16x256xf32>, i32 -> vector<16x256xf32>
    %cst_19 = arith.constant 0.000000e+00 : f32
    %40 = vector.broadcast %cst_19 : f32 to vector<16x256xf32>
    %41 = arith.select %38, %39, %40 : vector<16x256xi1>, vector<16x256xf32>
    %42 = arith.addf %36, %41 : vector<16x256xf32>
    %c15_i32_20 = arith.constant 15 : i32
    %43 = vector.broadcast %c15_i32_20 : i32 to vector<16x256xi32>
    %44 = arith.cmpi slt, %24, %43 : vector<16x256xi32>
    %c15_i32_21 = arith.constant 15 : i32
    %45 = tpu.dynamic_rotate %36 by %c15_i32_21 dim 0 : vector<16x256xf32>, i32 -> vector<16x256xf32>
    %cst_22 = arith.constant 0.000000e+00 : f32
    %46 = vector.broadcast %cst_22 : f32 to vector<16x256xf32>
    %47 = arith.select %44, %45, %46 : vector<16x256xi1>, vector<16x256xf32>
    %48 = arith.addf %42, %47 : vector<16x256xf32>
    %cst_23 = arith.constant 0.111111112 : f32
    %49 = vector.broadcast %cst_23 : f32 to vector<16x256xf32>
    %50 = arith.mulf %48, %49 : vector<16x256xf32>
    %cst_24 = arith.constant 0.000000e+00 : f32
    %51 = vector.broadcast %cst_24 : f32 to vector<16x256xf32>
    %52 = arith.maximumf %50, %51 : vector<16x256xf32>
    %c0_25 = arith.constant 0 : index
    %c0_26 = arith.constant 0 : index
    %c0_27 = arith.constant 0 : index
    %53 = vector.load %arg4[%c0_25, %c0_26, %c0_27] : memref<1x256x3xf32, #tpu.memory_space<vmem>>, vector<1x256x3xf32>
    %54 = vector.shape_cast %53 : vector<1x256x3xf32> to vector<256x3xf32>
    %cst_28 = arith.constant dense<0.000000e+00> : vector<16x3xf32>
    %55 = tpu.matmul %52, %54, %cst_28 {dimension_numbers = #tpu.dot_dimension_numbers<[1], [0], [0], [1], [0, 0, 1, 1], [], []>} : vector<16x256xf32>, vector<256x3xf32>, vector<16x3xf32> -> vector<16x3xf32>
    %c0_29 = arith.constant 0 : index
    %c0_30 = arith.constant 0 : index
    %c0_31 = arith.constant 0 : index
    %56 = vector.load %arg5[%c0_29, %c0_30, %c0_31] : memref<1x1x3xf32, #tpu.memory_space<vmem>>, vector<1x1x3xf32>
    %57 = vector.shape_cast %56 : vector<1x1x3xf32> to vector<1x3xf32>
    %58 = vector.broadcast %57 : vector<1x3xf32> to vector<16x3xf32>
    %59 = arith.addf %55, %58 : vector<16x3xf32>
    %c0_32 = arith.constant 0 : index
    %c0_33 = arith.constant 0 : index
    %c0_34 = arith.constant 0 : index
    %60 = vector.load %arg6[%c0_32, %c0_33, %c0_34] : memref<1x16x3xf32, #tpu.memory_space<vmem>>, vector<1x16x3xf32>
    %61 = vector.shape_cast %60 : vector<1x16x3xf32> to vector<16x3xf32>
    %62 = vector.shape_cast %59 : vector<16x3xf32> to vector<1x16x3xf32>
    tpu.vector_store %arg6[%c0_32, %c0_33, %c0_34], %62 {strides = array<i32>} : memref<1x16x3xf32, #tpu.memory_space<vmem>>, vector<1x16x3xf32>,
    return
  }
  func.func @transform_0(%arg0: i32) -> (i32, i32, i32) {
    %c0_i32 = arith.constant 0 : i32
    %c0_i32_0 = arith.constant 0 : i32
    %c0_i32_1 = arith.constant 0 : i32
    return %arg0, %c0_i32, %c0_i32_0 : i32, i32, i32
  }
  func.func @transform_1(%arg0: i32) -> (i32, i32, i32) {
    %c0_i32 = arith.constant 0 : i32
    %c0_i32_0 = arith.constant 0 : i32
    %c0_i32_1 = arith.constant 0 : i32
    return %arg0, %c0_i32, %c0_i32_0 : i32, i32, i32
  }
  func.func @transform_2(%arg0: i32) -> (i32, i32, i32) {
    %c0_i32 = arith.constant 0 : i32
    %c0_i32_0 = arith.constant 0 : i32
    %c0_i32_1 = arith.constant 0 : i32
    return %arg0, %c0_i32, %c0_i32_0 : i32, i32, i32
  }
  func.func @transform_3(%arg0: i32) -> (i32, i32, i32) {
    %c0_i32 = arith.constant 0 : i32
    %c0_i32_0 = arith.constant 0 : i32
    %c0_i32_1 = arith.constant 0 : i32
    return %arg0, %c0_i32, %c0_i32_0 : i32, i32, i32
  }
  func.func @transform_4(%arg0: i32) -> (i32, i32, i32) {
    %c0_i32 = arith.constant 0 : i32
    %c0_i32_0 = arith.constant 0 : i32
    %c0_i32_1 = arith.constant 0 : i32
    return %arg0, %c0_i32, %c0_i32_0 : i32, i32, i32
  }
  func.func @transform_5(%arg0: i32) -> (i32, i32, i32) {
    %c0_i32 = arith.constant 0 : i32
    %c0_i32_0 = arith.constant 0 : i32
    %c0_i32_1 = arith.constant 0 : i32
    return %arg0, %c0_i32, %c0_i32_0 : i32, i32, i32
  }
}

</mosaic_0001>

<llo_original>
// kernel: cnn_layer_forward.1
$region0: #{cnn_layer_forward.1}
  #allocation0 [shape = 'u32[]', space=smem, size = 0x4, offset = 0x4, fixed_abs, tag = 'smem constant byte address 0x4 - core index']
  #allocation1 [shape = 'u32[144,128]{1,0:T(1,128)}', space=vmem, size = 0x12000, scoped, tag = 'internal scratch']
  %s0 = inlined_call_operand.vmem [shape: f32[2,16,8], index: 0, kind: input, shape index: {}]
  %s1 = inlined_call_operand.vmem [shape: f32[2,24,256], index: 1, kind: input, shape index: {}]
  %s2 = inlined_call_operand.vmem [shape: f32[2,1,256], index: 2, kind: input, shape index: {}]
  %s3 = inlined_call_operand.vmem [shape: f32[2,256,3], index: 3, kind: input, shape index: {}]
  %s4 = inlined_call_operand.vmem [shape: f32[2,1,3], index: 4, kind: input, shape index: {}]
  %s5 = inlined_call_operand.vmem [shape: f32[2,16,3], index: 5, kind: output, shape index: {}]
  %s6 = sld [smem:[#allocation0]]
  $region53: #{cnn_layer_forward.1} parent=0
    _
  %s8 = ssub.s32 1, %s6
  %s9 = scalar_select 0, %s8, %s6
  loop: start=0, step=1, limit=4
  $region2: #{cnn_layer_forward.1} parent=0 // loop_pre_header
    _
  $region3: #{cnn_layer_forward.1} parent=0 // loop_header
    %s11 = sphi 0, %s15
    %p12 = scmp.ge.s32.totalorder %s11, 4
    %s21 = sphi 0, %s23
    %s24 = sphi 0, %s21
    %s25 = sphi 0, %s24
    %s41 = sphi 0, %s25
    %s47 = sphi 0, %s49
    %s50 = sphi 0, %s47
    %s51 = sphi 0, %s50
    %s67 = sphi 0, %s51
    %s73 = sphi 0, %s75
    %s76 = sphi 0, %s73
    %s77 = sphi 0, %s76
    %s93 = sphi 0, %s77
    %s99 = sphi 0, %s101
    %s102 = sphi 0, %s99
    %s103 = sphi 0, %s102
    %s119 = sphi 0, %s103
    %s125 = sphi 0, %s127
    %s128 = sphi 0, %s125
    %s129 = sphi 0, %s128
    %s145 = sphi 0, %s129
    %s151 = sphi 0, %s153
    %s154 = sphi 0, %s151
    %s155 = sphi 0, %s154
    %s171 = sphi 0, %s155
  $region4: #{cnn_layer_forward.1} parent=0 // loop_header_branch
    %14 = sbr.rel (%p12) target = $region8
  $region5: #{cnn_layer_forward.1} parent=0 // loop_body
    %s16 = ssub.s32 %s11, 1
    %s17 = ssub.s32 %s11, 2
    %s18 = sadd.s32 %s11, 1
    %s19 = ssub.s32 %s11, %s18
    %p20 = scmp.eq.s32.totalorder %s19, 0
    %s22 = sadd.s32 %s21, 1
    %s23 = scalar_select %p20, %s21, %s22
    %p26 = pneg %p20
    %p27 = scmp.eq.s32.totalorder %s11, 1
    %p28 = por %p26, %p27
    %p29 = scmp.ne.s32.totalorder %s21, %s24
    %p30 = scmp.eq.s32.totalorder %s11, 0
    %p31 = por %p29, %p30
    %p32 = scmp.ne.s32.totalorder %s21, %s24
    %p33 = scmp.eq.s32.totalorder %s16, 1
    %p34 = por %p32, %p33
    %p35 = scmp.ne.s32.totalorder %s24, %s25
    %p36 = scmp.eq.s32.totalorder %s16, 0
    %p37 = por %p35, %p36
    %p38 = scmp.ne.s32.totalorder %s24, %s25
    %p39 = scmp.eq.s32.totalorder %s17, 1
    %p40 = por %p38, %p39
    %p42 = scmp.ne.s32.totalorder %s25, %s41
    %p43 = scmp.eq.s32.totalorder %s17, 0
    %p44 = por %p42, %p43
    %s45 = ssub.s32 %s11, %s18
    %p46 = scmp.eq.s32.totalorder %s45, 0
    %s48 = sadd.s32 %s47, 1
    %s49 = scalar_select %p46, %s47, %s48
    %p52 = pneg %p46
    %p53 = scmp.eq.s32.totalorder %s11, 1
    %p54 = por %p52, %p53
    %p55 = scmp.ne.s32.totalorder %s47, %s50
    %p56 = scmp.eq.s32.totalorder %s11, 0
    %p57 = por %p55, %p56
    %p58 = scmp.ne.s32.totalorder %s47, %s50
    %p59 = scmp.eq.s32.totalorder %s16, 1
    %p60 = por %p58, %p59
    %p61 = scmp.ne.s32.totalorder %s50, %s51
    %p62 = scmp.eq.s32.totalorder %s16, 0
    %p63 = por %p61, %p62
    %p64 = scmp.ne.s32.totalorder %s50, %s51
    %p65 = scmp.eq.s32.totalorder %s17, 1
    %p66 = por %p64, %p65
    %p68 = scmp.ne.s32.totalorder %s51, %s67
    %p69 = scmp.eq.s32.totalorder %s17, 0
    %p70 = por %p68, %p69
    %s71 = ssub.s32 %s11, %s18
    %p72 = scmp.eq.s32.totalorder %s71, 0
    %s74 = sadd.s32 %s73, 1
    %s75 = scalar_select %p72, %s73, %s74
    %p78 = pneg %p72
    %p79 = scmp.eq.s32.totalorder %s11, 1
    %p80 = por %p78, %p79
    %p81 = scmp.ne.s32.totalorder %s73, %s76
    %p82 = scmp.eq.s32.totalorder %s11, 0
    %p83 = por %p81, %p82
    %p84 = scmp.ne.s32.totalorder %s73, %s76
    %p85 = scmp.eq.s32.totalorder %s16, 1
    %p86 = por %p84, %p85
    %p87 = scmp.ne.s32.totalorder %s76, %s77
    %p88 = scmp.eq.s32.totalorder %s16, 0
    %p89 = por %p87, %p88
    %p90 = scmp.ne.s32.totalorder %s76, %s77
    %p91 = scmp.eq.s32.totalorder %s17, 1
    %p92 = por %p90, %p91
    %p94 = scmp.ne.s32.totalorder %s77, %s93
    %p95 = scmp.eq.s32.totalorder %s17, 0
    %p96 = por %p94, %p95
    %s97 = ssub.s32 %s11, %s18
    %p98 = scmp.eq.s32.totalorder %s97, 0
    %s100 = sadd.s32 %s99, 1
    %s101 = scalar_select %p98, %s99, %s100
    %p104 = pneg %p98
    %p105 = scmp.eq.s32.totalorder %s11, 1
    %p106 = por %p104, %p105
    %p107 = scmp.ne.s32.totalorder %s99, %s102
    %p108 = scmp.eq.s32.totalorder %s11, 0
    %p109 = por %p107, %p108
    %p110 = scmp.ne.s32.totalorder %s99, %s102
    %p111 = scmp.eq.s32.totalorder %s16, 1
    %p112 = por %p110, %p111
    %p113 = scmp.ne.s32.totalorder %s102, %s103
    %p114 = scmp.eq.s32.totalorder %s16, 0
    %p115 = por %p113, %p114
    %p116 = scmp.ne.s32.totalorder %s102, %s103
    %p117 = scmp.eq.s32.totalorder %s17, 1
    %p118 = por %p116, %p117
    %p120 = scmp.ne.s32.totalorder %s103, %s119
    %p121 = scmp.eq.s32.totalorder %s17, 0
    %p122 = por %p120, %p121
    %s123 = ssub.s32 %s11, %s18
    %p124 = scmp.eq.s32.totalorder %s123, 0
    %s126 = sadd.s32 %s125, 1
    %s127 = scalar_select %p124, %s125, %s126
    %p130 = pneg %p124
    %p131 = scmp.eq.s32.totalorder %s11, 1
    %p132 = por %p130, %p131
    %p133 = scmp.ne.s32.totalorder %s125, %s128
    %p134 = scmp.eq.s32.totalorder %s11, 0
    %p135 = por %p133, %p134
    %p136 = scmp.ne.s32.totalorder %s125, %s128
    %p137 = scmp.eq.s32.totalorder %s16, 1
    %p138 = por %p136, %p137
    %p139 = scmp.ne.s32.totalorder %s128, %s129
    %p140 = scmp.eq.s32.totalorder %s16, 0
    %p141 = por %p139, %p140
    %p142 = scmp.ne.s32.totalorder %s128, %s129
    %p143 = scmp.eq.s32.totalorder %s17, 1
    %p144 = por %p142, %p143
    %p146 = scmp.ne.s32.totalorder %s129, %s145
    %p147 = scmp.eq.s32.totalorder %s17, 0
    %p148 = por %p146, %p147
    %s149 = ssub.s32 %s11, %s18
    %p150 = scmp.eq.s32.totalorder %s149, 0
    %s152 = sadd.s32 %s151, 1
    %s153 = scalar_select %p150, %s151, %s152
    %p156 = pneg %p150
    %p157 = scmp.eq.s32.totalorder %s11, 1
    %p158 = por %p156, %p157
    %p159 = scmp.ne.s32.totalorder %s151, %s154
    %p160 = scmp.eq.s32.totalorder %s11, 0
    %p161 = por %p159, %p160
    %p162 = scmp.ne.s32.totalorder %s151, %s154
    %p163 = scmp.eq.s32.totalorder %s16, 1
    %p164 = por %p162, %p163
    %p165 = scmp.ne.s32.totalorder %s154, %s155
    %p166 = scmp.eq.s32.totalorder %s16, 0
    %p167 = por %p165, %p166
    %p168 = scmp.ne.s32.totalorder %s154, %s155
    %p169 = scmp.eq.s32.totalorder %s17, 1
    %p170 = por %p168, %p169
    %p172 = scmp.ne.s32.totalorder %s155, %s171
    %p173 = scmp.eq.s32.totalorder %s17, 0
    %p174 = por %p172, %p173
    %p175 = scmp.le.s32.totalorder 1, %s11
    %p176 = scmp.lt.s32.totalorder %s11, 3
    %p177 = pnand %p175, %p176
    %p178 = pneg %p177
    // Predicated region
    $region9: #{cnn_layer_forward.1} parent=5 // pred_check
      _
    $region10: #{cnn_layer_forward.1} parent=5 // pred_check_branch
      %180 = sbr.rel (%p177) target = $region12
    $region11: #{cnn_layer_forward.1} parent=5 // pred_region
      %s181 = ssub.s32 %s11, 1
    $region12: #{cnn_layer_forward.1} parent=5 // pred_fallthru
      _
    %p182 = scmp.lt.s32.totalorder %s11, 2
    // Predicated region
    $region13: #{cnn_layer_forward.1} parent=5 // pred_check
      %p183 = pneg %p182
    $region14: #{cnn_layer_forward.1} parent=5 // pred_check_branch
      %185 = sbr.rel (%p183) target = $region16
    $region15: #{cnn_layer_forward.1} parent=5 // pred_region
      // Predicated region
      $region17: #{cnn_layer_forward.1} parent=15 // pred_check
        %p186 = pneg %p31
      $region18: #{cnn_layer_forward.1} parent=15 // pred_check_branch
        %188 = sbr.rel (%p186) target = $region20
      $region19: #{cnn_layer_forward.1} parent=15 // pred_region
        %p189 = scmp.lt.s32.totalorder %s11, 1
        %s190 = scalar_select %p189, %s11, 1
        %s191 = smul.addr %s190, 2
        %s192 = smul.addr %s191, 8
        %s193 = scalar_lea.vmem %s0, %s192
      $region20: #{cnn_layer_forward.1} parent=15 // pred_fallthru
        _
      // Predicated region
      $region21: #{cnn_layer_forward.1} parent=15 // pred_check
        %p194 = pneg %p57
      $region22: #{cnn_layer_forward.1} parent=15 // pred_check_branch
        %196 = sbr.rel (%p194) target = $region24
      $region23: #{cnn_layer_forward.1} parent=15 // pred_region
        %p197 = scmp.lt.s32.totalorder %s11, 1
        %s198 = scalar_select %p197, %s11, 1
        %s199 = smul.addr %s198, 6
        %s200 = smul.addr %s199, 8
        %s201 = scalar_lea.vmem %s1, %s200
      $region24: #{cnn_layer_forward.1} parent=15 // pred_fallthru
        _
      // Predicated region
      $region25: #{cnn_layer_forward.1} parent=15 // pred_check
        %p202 = pneg %p83
      $region26: #{cnn_layer_forward.1} parent=15 // pred_check_branch
        %204 = sbr.rel (%p202) target = $region28
      $region27: #{cnn_layer_forward.1} parent=15 // pred_region
        %p205 = scmp.lt.s32.totalorder %s11, 1
        %s206 = scalar_select %p205, %s11, 1
        %s207 = smul.addr %s206, 2
        %s208 = scalar_lea.vmem %s2, %s207
      $region28: #{cnn_layer_forward.1} parent=15 // pred_fallthru
        _
      // Predicated region
      $region29: #{cnn_layer_forward.1} parent=15 // pred_check
        %p209 = pneg %p109
      $region30: #{cnn_layer_forward.1} parent=15 // pred_check_branch
        %211 = sbr.rel (%p209) target = $region32
      $region31: #{cnn_layer_forward.1} parent=15 // pred_region
        %p212 = scmp.lt.s32.totalorder %s11, 1
        %s213 = scalar_select %p212, %s11, 1
        %s214 = smul.addr %s213, 32
        %s215 = smul.addr %s214, 8
        %s216 = scalar_lea.vmem %s3, %s215
      $region32: #{cnn_layer_forward.1} parent=15 // pred_fallthru
        _
      // Predicated region
      $region33: #{cnn_layer_forward.1} parent=15 // pred_check
        %p217 = pneg %p135
      $region34: #{cnn_layer_forward.1} parent=15 // pred_check_branch
        %219 = sbr.rel (%p217) target = $region36
      $region35: #{cnn_layer_forward.1} parent=15 // pred_region
        %p220 = scmp.lt.s32.totalorder %s11, 1
        %s221 = scalar_select %p220, %s11, 1
        %s222 = scalar_lea.vmem %s4, %s221
      $region36: #{cnn_layer_forward.1} parent=15 // pred_fallthru
        _
    $region16: #{cnn_layer_forward.1} parent=5 // pred_fallthru
      _
    %p223 = scmp.le.s32.totalorder 1, %s11
    %p224 = scmp.lt.s32.totalorder %s11, 3
    %p225 = pnand %p223, %p224
    %p226 = pneg %p225
    // Predicated region
    $region37: #{cnn_layer_forward.1} parent=5 // pred_check
      _
    $region38: #{cnn_layer_forward.1} parent=5 // pred_check_branch
      %228 = sbr.rel (%p225) target = $region40
    $region39: #{cnn_layer_forward.1} parent=5 // pred_region
      %s229 = ssub.s32 %s11, 1
      %p230 = scmp.lt.s32.totalorder %s16, 1
      %s231 = scalar_select %p230, %s16, 1
      %s232 = smul.addr %s231, 2
      %s233 = smul.addr %s232, 8
      %s234 = scalar_lea.vmem %s0, %s233
      %p235 = pneg %p37
      %p236 = pneg %p34
      %p237 = scmp.lt.s32.totalorder %s16, 1
      %s238 = scalar_select %p237, %s16, 1
      %s239 = smul.addr %s238, 6
      %s240 = smul.addr %s239, 8
      %s241 = scalar_lea.vmem %s1, %s240
      %p242 = pneg %p63
      %p243 = pneg %p60
      %p244 = scmp.lt.s32.totalorder %s16, 1
      %s245 = scalar_select %p244, %s16, 1
      %s246 = smul.addr %s245, 2
      %s247 = scalar_lea.vmem %s2, %s246
      %p248 = pneg %p89
      %p249 = pneg %p86
      %p250 = scmp.lt.s32.totalorder %s16, 1
      %s251 = scalar_select %p250, %s16, 1
      %s252 = smul.addr %s251, 32
      %s253 = smul.addr %s252, 8
      %s254 = scalar_lea.vmem %s3, %s253
      %p255 = pneg %p115
      %p256 = pneg %p112
      %p257 = scmp.lt.s32.totalorder %s16, 1
      %s258 = scalar_select %p257, %s16, 1
      %s259 = scalar_lea.vmem %s4, %s258
      %p260 = pneg %p141
      %p261 = pneg %p138
      %p262 = pneg %p167
      %p263 = pneg %p164
      %p264 = scmp.lt.s32.totalorder %s16, 1
      %s265 = scalar_select %p264, %s16, 1
      %s266 = smul.addr %s265, 2
      %s267 = smul.addr %s266, 8
      %s268 = scalar_lea.vmem %s5, %s267
      %p269 = scmp.lt.s32.totalorder %s16, 1
      %s270 = scalar_select %p269, %s16, 1
      %s271 = smul.addr %s270, 2
      %s272 = smul.addr %s271, 8
      %s273 = scalar_lea.vmem %s0, %s272
      %p274 = scmp.lt.s32.totalorder %s16, 1
      %s275 = scalar_select %p274, %s16, 1
      %s276 = smul.addr %s275, 6
      %s277 = smul.addr %s276, 8
      %s278 = scalar_lea.vmem %s1, %s277
      %p279 = scmp.lt.s32.totalorder %s16, 1
      %s280 = scalar_select %p279, %s16, 1
      %s281 = smul.addr %s280, 2
      %s282 = scalar_lea.vmem %s2, %s281
      %p283 = scmp.lt.s32.totalorder %s16, 1
      %s284 = scalar_select %p283, %s16, 1
      %s285 = smul.addr %s284, 32
      %s286 = smul.addr %s285, 8
      %s287 = scalar_lea.vmem %s3, %s286
      %p288 = scmp.lt.s32.totalorder %s16, 1
      %s289 = scalar_select %p288, %s16, 1
      %s290 = scalar_lea.vmem %s4, %s289
      %p291 = scmp.lt.s32.totalorder %s16, 1
      %s292 = scalar_select %p291, %s16, 1
      %s293 = smul.addr %s292, 2
      %s294 = smul.addr %s293, 8
      %s295 = scalar_lea.vmem %s5, %s294
      %v296 = vld [vmem:[%s273] sm:$0xff]
      %v297 = vld [vmem:[%s273 + $0x8] sm:$0xff]
      %v298 = vlaneseq
      %v299 = vshrl.u32 %v298, 7
      %v300 = vadd.s32 %v299, 8
      %vm301 = vcmp.gt.s32.totalorder %v299, 0
      %vm302 = vcmp.gt.s32.totalorder %v300, 0
      %v303 = vrot.slane %v296, 7
      %v304 = vrot.slane %v297, 7
      %vm305 = vcmp.lt.s32.totalorder %v299, 1
      %v306 = vsel %vm305, %v303, %v304
      %v307 = vsel %vm305, %v304, %v303
      %v308 = vsel %vm301, %v307, 0.0
      %v309 = vsel %vm302, %v306, 0.0
      %vm310 = vcmp.lt.s32.totalorder %v299, 15
      %vm311 = vcmp.lt.s32.totalorder %v300, 15
      %v312 = vrot.slane %v296, 1
      %v313 = vrot.slane %v297, 1
      %vm314 = vcmp.lt.s32.totalorder %v299, 7
      %v315 = vsel %vm314, %v312, %v313
      %v316 = vsel %vm314, %v313, %v312
      %v317 = vsel %vm310, %v315, 0.0
      %v318 = vsel %vm311, %v316, 0.0
      %321 = vrot.lane.b32.xlu0 %v296, 8
      %v322 = vpop.permute.xlu0 %321
      %323 = vrot.lane.b32.xlu0 %v297, 8
      %v324 = vpop.permute.xlu0 %323
      %329 = vrot.lane.b32.xlu0 %v317, 16
      %v330 = vpop.permute.xlu0 %329
      %331 = vrot.lane.b32.xlu0 %v318, 16
      %v332 = vpop.permute.xlu0 %331
      %vm335 = vcmask 64512
      %v336 = vsel %vm335, %v308, %v322
      %v337 = vsel %vm335, %v309, %v324
      %vm338 = vcmask 130048
      %v339 = vsel %vm338, %v336, %v330
      %v340 = vsel %vm338, %v337, %v332
      %v341 = vld [vmem:[%s278] sm:$0xff]
      %v342 = vld [vmem:[%s278 + $0x8] sm:$0xff]
      %v343 = vld [vmem:[%s278 + $0x10] sm:$0xff]
      %v344 = vld [vmem:[%s278 + $0x18] sm:$0xff]
      %v345 = vld [vmem:[%s278 + $0x20] sm:$0xff]
      %v346 = vld [vmem:[%s278 + $0x28] sm:$0xff]
      %v347 = vld [vmem:[%s282] sm:$0x3]
      %v349 = vlaneseq
      %v350 = vshrl.u32 %v349, 7
      %v351 = vsub.s32 0, %v350
      %v352 = vrot.slane %v347, %v351
      %v353 = vlaneseq
      %v354 = vshrl.u32 %v353, 7
      %v355 = vsub.s32 1, %v354
      %v356 = vrot.slane %v347, %v355
      %vm359 = vcmask 195584
      %v361 = vsel %vm359, %v339, 0
      %v364 = vsel %vm359, %v340, 0
      %366 = vmatprep.subr.mxu0 0.0
      %367 = vmatpush1.msra.mxu0 0.0
      %368 = vmatprep.subr.mxu0 0.0
      %369 = vmatpush1.msra.mxu0 0.0
      %370 = vmatprep.subr.mxu0 0.0
      %371 = vmatpush1.msra.mxu0 0.0
      %372 = vmatprep.subr.mxu0 0.0
      %373 = vmatpush1.msra.mxu0 0.0
      %374 = vmatprep.subr.mxu0 0.0
      %375 = vmatpush1.msra.mxu0 0.0
      %376 = vmatprep.subr.mxu0 0.0
      %377 = vmatpush1.msra.mxu0 0.0
      %378 = vmatprep.subr.mxu0 0.0
      %379 = vmatpush1.msra.mxu0 0.0
      %380 = vmatprep.subr.mxu0 0.0
      %381 = vmatpush1.msra.mxu0 0.0
      %382 = vmatprep.subr.mxu0 0.0
      %383 = vmatpush1.msra.mxu0 0.0
      %384 = vmatprep.subr.mxu0 0.0
      %385 = vmatpush1.msra.mxu0 0.0
      %386 = vmatprep.subr.mxu0 0.0
      %387 = vmatpush1.msra.mxu0 0.0
      %388 = vmatprep.subr.mxu0 0.0
      %389 = vmatpush1.msra.mxu0 0.0
      %390 = vmatprep.subr.mxu0 0.0
      %391 = vmatpush1.msra.mxu0 0.0
      %392 = vmatprep.subr.mxu0 %v346
      %393 = vmatpush1.msra.mxu0 %v345
      %394 = vmatprep.subr.mxu0 %v344
      %395 = vmatpush1.msra.mxu0 %v343
      %396 = vmatprep.subr.mxu0 %v342
      %397 = vmatpush1.msra.mxu0 %v341
      %398 = vmatprep.subr.mxu0 0.0
      %399 = vmatpush2.msra.mxu0 0.0
      %400 = vmatprep.subr.mxu0 0.0
      %401 = vmatpush2.msra.mxu0 0.0
      %402 = vmatprep.subr.mxu0 0.0
      %403 = vmatpush2.msra.mxu0 0.0
      %404 = vmatprep.subr.mxu0 0.0
      %405 = vmatpush2.msra.mxu0 0.0
      %406 = vmatprep.subr.mxu0 0.0
      %407 = vmatpush2.msra.mxu0 0.0
      %408 = vmatprep.subr.mxu0 0.0
      %409 = vmatpush2.msra.mxu0 0.0
      %410 = vmatprep.subr.mxu0 0.0
      %411 = vmatpush2.msra.mxu0 0.0
      %412 = vmatprep.subr.mxu0 0.0
      %413 = vmatpush2.msra.mxu0 0.0
      %414 = vmatprep.subr.mxu0 0.0
      %415 = vmatpush2.msra.mxu0 0.0
      %416 = vmatprep.subr.mxu0 0.0
      %417 = vmatpush2.msra.mxu0 0.0
      %418 = vmatprep.subr.mxu0 0.0
      %419 = vmatpush2.msra.mxu0 0.0
      %420 = vmatprep.subr.mxu0 0.0
      %421 = vmatpush2.msra.mxu0 0.0
      %422 = vmatprep.subr.mxu0 0.0
      %423 = vmatpush2.msra.mxu0 0.0
      %424 = vmatprep.subr.mxu0 0.0
      %425 = vmatpush2.msra.mxu0 0.0
      %426 = vmatprep.subr.mxu0 0.0
      %427 = vmatpush2.msra.mxu0 0.0
      %428 = vmatprep.subr.mxu0 0.0
      %429 = vmatpush2.msra.mxu0 0.0
      %430 = vmatprep.mubr.f32.mxu0 0.0
      %431 = vmatmul.mubr.f32.gmra.mxu0 %v361
      %v432 = vpop.f32.mrf.mxu0
      %v433 = vadd.f32 %v352, %v432
      %v434 = vpop.f32.mrf.mxu0
      %v435 = vadd.f32 %v356, %v434
      %436 = vmatprep.mubr.f32.mxu0 0.0
      %437 = vmatmul.mubr.f32.gmra.mxu0 %v364
      %v438 = vpop.f32.mrf.mxu0
      %v439 = vadd.f32 %v352, %v438
      %v440 = vpop.f32.mrf.mxu0
      %v441 = vadd.f32 %v356, %v440
      %442 = vdwg.mxu0
      %v443 = vmax.f32 %v433, 0.0
      %v444 = vmax.f32 %v435, 0.0
      %v445 = vmax.f32 %v439, 0.0
      %v446 = vmax.f32 %v441, 0.0
      %v447 = vlaneseq
      %v448 = vand.u32 %v447, 127
      %v449 = vadd.s32 %v448, 128
      %vm450 = vcmp.gt.s32.totalorder %v448, 0
      %vm451 = vcmp.gt.s32.totalorder %v449, 0
      %452 = vrot.lane.b32.xlu0 %v443, 1
      %v453 = vpop.permute.xlu0 %452
      %454 = vrot.lane.b32.xlu0 %v445, 1
      %v455 = vpop.permute.xlu0 %454
      %456 = vrot.lane.b32.xlu0 %v444, 1
      %v457 = vpop.permute.xlu0 %456
      %458 = vrot.lane.b32.xlu0 %v446, 1
      %v459 = vpop.permute.xlu0 %458
      %vm460 = vcmp.lt.s32.totalorder %v448, 1
      %v461 = vsel %vm460, %v453, %v457
      %v462 = vsel %vm460, %v455, %v459
      %v463 = vsel %vm460, %v457, %v453
      %v464 = vsel %vm460, %v459, %v455
      %v465 = vsel %vm450, %v463, 0.0
      %v466 = vsel %vm451, %v461, 0.0
      %v467 = vsel %vm450, %v464, 0.0
      %v468 = vsel %vm451, %v462, 0.0
      %v469 = vadd.f32 %v443, %v465
      %v470 = vadd.f32 %v444, %v466
      %v471 = vadd.f32 %v445, %v467
      %v472 = vadd.f32 %v446, %v468
      %vm473 = vcmp.lt.s32.totalorder %v448, 255
      %vm474 = vcmp.lt.s32.totalorder %v449, 255
      %475 = vrot.lane.b32.xlu0 %v443, 127
      %v476 = vpop.permute.xlu0 %475
      %477 = vrot.lane.b32.xlu0 %v445, 127
      %v478 = vpop.permute.xlu0 %477
      %479 = vrot.lane.b32.xlu0 %v444, 127
      %v480 = vpop.permute.xlu0 %479
      %481 = vrot.lane.b32.xlu0 %v446, 127
      %v482 = vpop.permute.xlu0 %481
      %vm483 = vcmp.lt.s32.totalorder %v448, 127
      %v484 = vsel %vm483, %v476, %v480
      %v485 = vsel %vm483, %v478, %v482
      %v486 = vsel %vm483, %v480, %v476
      %v487 = vsel %vm483, %v482, %v478
      %v488 = vsel %vm473, %v484, 0.0
      %v489 = vsel %vm474, %v486, 0.0
      %v490 = vsel %vm473, %v485, 0.0
      %v491 = vsel %vm474, %v487, 0.0
      %v492 = vadd.f32 %v469, %v488
      %v493 = vadd.f32 %v470, %v489
      %v494 = vadd.f32 %v471, %v490
      %v495 = vadd.f32 %v472, %v491
      %v496 = vrot.slane %v492, 7
      %v497 = vrot.slane %v493, 7
      %v498 = vrot.slane %v494, 7
      %v499 = vrot.slane %v495, 7
      %v500 = vsel %vm305, %v496, %v498
      %v501 = vsel %vm305, %v497, %v499
      %v502 = vsel %vm305, %v498, %v496
      %v503 = vsel %vm305, %v499, %v497
      %v504 = vsel %vm301, %v502, 0.0
      %v505 = vsel %vm301, %v503, 0.0
      %v506 = vsel %vm302, %v500, 0.0
      %v507 = vsel %vm302, %v501, 0.0
      %v508 = vadd.f32 %v492, %v504
      %v509 = vadd.f32 %v493, %v505
      %v510 = vadd.f32 %v494, %v506
      %v511 = vadd.f32 %v495, %v507
      %v512 = vrot.slane %v492, 1
      %v513 = vrot.slane %v493, 1
      %v514 = vrot.slane %v494, 1
      %v515 = vrot.slane %v495, 1
      %v516 = vsel %vm314, %v512, %v514
      %v517 = vsel %vm314, %v513, %v515
      %v518 = vsel %vm314, %v514, %v512
      %v519 = vsel %vm314, %v515, %v513
      %v520 = vsel %vm310, %v516, 0.0
      %v521 = vsel %vm310, %v517, 0.0
      %v522 = vsel %vm311, %v518, 0.0
      %v523 = vsel %vm311, %v519, 0.0
      %v524 = vadd.f32 %v508, %v520
      %v525 = vadd.f32 %v509, %v521
      %v526 = vadd.f32 %v510, %v522
      %v527 = vadd.f32 %v511, %v523
      %v528 = vmul.f32 %v524, 0.11111111
      %v529 = vmul.f32 %v525, 0.11111111
      %v530 = vmul.f32 %v526, 0.11111111
      %v531 = vmul.f32 %v527, 0.11111111
      %v532 = vmax.f32 %v528, 0.0
      %v533 = vmax.f32 %v529, 0.0
      %v534 = vmax.f32 %v530, 0.0
      %v535 = vmax.f32 %v531, 0.0
      %v536 = vld [vmem:[%s287] sm:$0xff]
      %v537 = vld [vmem:[%s287 + $0x8] sm:$0xff]
      %v538 = vld [vmem:[%s287 + $0x10] sm:$0xff]
      %v539 = vld [vmem:[%s287 + $0x18] sm:$0xff]
      %v540 = vld [vmem:[%s287 + $0x20] sm:$0xff]
      %v541 = vld [vmem:[%s287 + $0x28] sm:$0xff]
      %v542 = vld [vmem:[%s287 + $0x30] sm:$0xff]
      %v543 = vld [vmem:[%s287 + $0x38] sm:$0xff]
      %v544 = vld [vmem:[%s287 + $0x40] sm:$0xff]
      %v545 = vld [vmem:[%s287 + $0x48] sm:$0xff]
      %v546 = vld [vmem:[%s287 + $0x50] sm:$0xff]
      %v547 = vld [vmem:[%s287 + $0x58] sm:$0xff]
      %v548 = vld [vmem:[%s287 + $0x60] sm:$0xff]
      %v549 = vld [vmem:[%s287 + $0x68] sm:$0xff]
      %v550 = vld [vmem:[%s287 + $0x70] sm:$0xff]
      %v551 = vld [vmem:[%s287 + $0x78] sm:$0xff]
      %v552 = vld [vmem:[%s287 + $0x80] sm:$0xff]
      %v553 = vld [vmem:[%s287 + $0x88] sm:$0xff]
      %v554 = vld [vmem:[%s287 + $0x90] sm:$0xff]
      %v555 = vld [vmem:[%s287 + $0x98] sm:$0xff]
      %v556 = vld [vmem:[%s287 + $0xa0] sm:$0xff]
      %v557 = vld [vmem:[%s287 + $0xa8] sm:$0xff]
      %v558 = vld [vmem:[%s287 + $0xb0] sm:$0xff]
      %v559 = vld [vmem:[%s287 + $0xb8] sm:$0xff]
      %v560 = vld [vmem:[%s287 + $0xc0] sm:$0xff]
      %v561 = vld [vmem:[%s287 + $0xc8] sm:$0xff]
      %v562 = vld [vmem:[%s287 + $0xd0] sm:$0xff]
      %v563 = vld [vmem:[%s287 + $0xd8] sm:$0xff]
      %v564 = vld [vmem:[%s287 + $0xe0] sm:$0xff]
      %v565 = vld [vmem:[%s287 + $0xe8] sm:$0xff]
      %v566 = vld [vmem:[%s287 + $0xf0] sm:$0xff]
      %v567 = vld [vmem:[%s287 + $0xf8] sm:$0xff]
      %v568 = vld [vmem:[%s290] sm:$0x1]
      %v570 = vlaneseq
      %v571 = vshrl.u32 %v570, 7
      %v572 = vsub.s32 0, %v571
      %v573 = vrot.slane %v568, %v572
      %575 = vmatprep.subr.mxu0 0.0
      %576 = vmatpush1.msra.mxu0 %v551
      %577 = vmatprep.subr.mxu0 0.0
      %578 = vmatpush1.msra.mxu0 %v550
      %579 = vmatprep.subr.mxu0 0.0
      %580 = vmatpush1.msra.mxu0 %v549
      %581 = vmatprep.subr.mxu0 0.0
      %582 = vmatpush1.msra.mxu0 %v548
      %583 = vmatprep.subr.mxu0 0.0
      %584 = vmatpush1.msra.mxu0 %v547
      %585 = vmatprep.subr.mxu0 0.0
      %586 = vmatpush1.msra.mxu0 %v546
      %587 = vmatprep.subr.mxu0 0.0
      %588 = vmatpush1.msra.mxu0 %v545
      %589 = vmatprep.subr.mxu0 0.0
      %590 = vmatpush1.msra.mxu0 %v544
      %591 = vmatprep.subr.mxu0 0.0
      %592 = vmatpush1.msra.mxu0 %v543
      %593 = vmatprep.subr.mxu0 0.0
      %594 = vmatpush1.msra.mxu0 %v542
      %595 = vmatprep.subr.mxu0 0.0
      %596 = vmatpush1.msra.mxu0 %v541
      %597 = vmatprep.subr.mxu0 0.0
      %598 = vmatpush1.msra.mxu0 %v540
      %599 = vmatprep.subr.mxu0 0.0
      %600 = vmatpush1.msra.mxu0 %v539
      %601 = vmatprep.subr.mxu0 0.0
      %602 = vmatpush1.msra.mxu0 %v538
      %603 = vmatprep.subr.mxu0 0.0
      %604 = vmatpush1.msra.mxu0 %v537
      %605 = vmatprep.subr.mxu0 0.0
      %606 = vmatpush1.msra.mxu0 %v536
      %607 = vmatprep.subr.mxu0 0.0
      %608 = vmatpush2.msra.mxu0 %v567
      %609 = vmatprep.subr.mxu0 0.0
      %610 = vmatpush2.msra.mxu0 %v566
      %611 = vmatprep.subr.mxu0 0.0
      %612 = vmatpush2.msra.mxu0 %v565
      %613 = vmatprep.subr.mxu0 0.0
      %614 = vmatpush2.msra.mxu0 %v564
      %615 = vmatprep.subr.mxu0 0.0
      %616 = vmatpush2.msra.mxu0 %v563
      %617 = vmatprep.subr.mxu0 0.0
      %618 = vmatpush2.msra.mxu0 %v562
      %619 = vmatprep.subr.mxu0 0.0
      %620 = vmatpush2.msra.mxu0 %v561
      %621 = vmatprep.subr.mxu0 0.0
      %622 = vmatpush2.msra.mxu0 %v560
      %623 = vmatprep.subr.mxu0 0.0
      %624 = vmatpush2.msra.mxu0 %v559
      %625 = vmatprep.subr.mxu0 0.0
      %626 = vmatpush2.msra.mxu0 %v558
      %627 = vmatprep.subr.mxu0 0.0
      %628 = vmatpush2.msra.mxu0 %v557
      %629 = vmatprep.subr.mxu0 0.0
      %630 = vmatpush2.msra.mxu0 %v556
      %631 = vmatprep.subr.mxu0 0.0
      %632 = vmatpush2.msra.mxu0 %v555
      %633 = vmatprep.subr.mxu0 0.0
      %634 = vmatpush2.msra.mxu0 %v554
      %635 = vmatprep.subr.mxu0 0.0
      %636 = vmatpush2.msra.mxu0 %v553
      %637 = vmatprep.subr.mxu0 0.0
      %638 = vmatpush2.msra.mxu0 %v552
      %639 = vmatprep.mubr.f32.mxu0 %v533
      %640 = vmatmul.mubr.f32.gmra.mxu0 %v532
      %v641 = vpop.f32.mrf.mxu0
      %v642 = vadd.f32 %v573, %v641
      %v643 = vpop.f32.mrf.mxu0
      %644 = vmatprep.mubr.f32.mxu0 %v535
      %645 = vmatmul.mubr.f32.gmra.mxu0 %v534
      %v646 = vpop.f32.mrf.mxu0
      %v647 = vadd.f32 %v573, %v646
      %v648 = vpop.f32.mrf.mxu0
      %649 = vdwg.mxu0
      %vm650 = vcmask 23552
      %651 = vst.msk [vmem:[%s295] sm:$0xff] %vm650, %v642
      %652 = vst.msk [vmem:[%s295 + $0x8] sm:$0xff] %vm650, %v647
      %p653 = scmp.lt.s32.totalorder %s16, 1
      %s654 = scalar_select %p653, %s16, 1
      %s655 = smul.addr %s654, 2
      %s656 = smul.addr %s655, 8
      %s657 = scalar_lea.vmem %s5, %s656
      // Predicated region
      $region41: #{cnn_layer_forward.1} parent=39 // pred_check
        %p658 = pneg %p164
      $region42: #{cnn_layer_forward.1} parent=39 // pred_check_branch
        %660 = sbr.rel (%p658) target = $region44
      $region43: #{cnn_layer_forward.1} parent=39 // pred_region
        _
      $region44: #{cnn_layer_forward.1} parent=39 // pred_fallthru
        _
    $region40: #{cnn_layer_forward.1} parent=5 // pred_fallthru
      _
    %p661 = scmp.le.s32.totalorder 2, %s11
    // Predicated region
    $region45: #{cnn_layer_forward.1} parent=5 // pred_check
      %p662 = pneg %p661
    $region46: #{cnn_layer_forward.1} parent=5 // pred_check_branch
      %664 = sbr.rel (%p662) target = $region48
    $region47: #{cnn_layer_forward.1} parent=5 // pred_region
      %s665 = ssub.s32 %s11, 2
      // Predicated region
      $region49: #{cnn_layer_forward.1} parent=47 // pred_check
        %p666 = pneg %p170
      $region50: #{cnn_layer_forward.1} parent=47 // pred_check_branch
        %668 = sbr.rel (%p666) target = $region52
      $region51: #{cnn_layer_forward.1} parent=47 // pred_region
        %p669 = scmp.lt.s32.totalorder %s17, 1
        %s670 = scalar_select %p669, %s17, 1
        %s671 = smul.addr %s670, 2
        %s672 = smul.addr %s671, 8
        %s673 = scalar_lea.vmem %s5, %s672
      $region52: #{cnn_layer_forward.1} parent=47 // pred_fallthru
        _
    $region48: #{cnn_layer_forward.1} parent=5 // pred_fallthru
      _
  $region6: #{cnn_layer_forward.1} parent=0 // loop_footer
    %s15 = sadd.s32 1, %s11
  $region7: #{cnn_layer_forward.1} parent=0 // loop_footer_branch
    %10 = sbr.rel target = $region3
  $region8: #{cnn_layer_forward.1} parent=0 // loop_exit
    _

</llo_original>
